<compile_context>
chip_gen: v7x
topology: tpu7x:2x2x1
jax: 0.10.0
libtpu: 0.0.40
codegen_flags: <defaults>
</compile_context>

<pallas_src>
import functools

import jax
import jax.numpy as jnp
from jax import lax
from jax.experimental import pallas as pl
from jax.experimental.pallas import tpu as pltpu


# ---------------------------------------------------------------------------
# Pallas kernel: per batch n, for every stride-phase p
#     y_p = W_p(Cout, Kp) @ patches_p(Kp, L)        (MXU, bf16 -> f32 accum)
# accumulate per-channel sum / sum-of-squares across phases, then apply
# InstanceNorm2d (affine=False, biased variance, eps=1e-5) jointly over all
# phases (= all spatial positions), then ReLU.  Spatial extent L sits on the
# lane dimension -> lane-dense VPU work and unmasked stores.
# ---------------------------------------------------------------------------
def _upsample_kernel(patch_ref, w_ref, o_ref, *, n_phase, inv_count):
    # patch_ref: (P, Kp, L)    bf16
    # w_ref:     (P, Cout, Kp) bf16
    # o_ref:     (P, Cout, L)  f32
    cout = o_ref.shape[1]
    s1 = jnp.zeros((cout, 1), jnp.float32)
    s2 = jnp.zeros((cout, 1), jnp.float32)
    for p in range(n_phase):                      # static unroll, P is tiny
        y = jnp.dot(w_ref[p], patch_ref[p],
                    preferred_element_type=jnp.float32)        # (Cout, L)
        o_ref[p] = y                              # park raw conv output in VMEM
        s1 = s1 + jnp.sum(y, axis=-1, keepdims=True)
        s2 = s2 + jnp.sum(y * y, axis=-1, keepdims=True)
    mean = s1 * inv_count
    var = jnp.maximum(s2 * inv_count - mean * mean, 0.0)
    scale = lax.rsqrt(var + 1e-5)
    for p in range(n_phase):
        o_ref[p] = jnp.maximum((o_ref[p] - mean) * scale, 0.0)


def _fused_matmul_norm_relu(patches, w_ph):
    # patches: (N, P, Kp, L) bf16 ; w_ph: (P, Cout, Kp) bf16
    N, P, Kp, L = patches.shape
    Cout = w_ph.shape[1]
    kernel = functools.partial(_upsample_kernel, n_phase=P,
                               inv_count=1.0 / float(P * L))
    return pl.pallas_call(
        kernel,
        out_shape=jax.ShapeDtypeStruct((N, P, Cout, L), jnp.float32),
        grid=(N,),
        in_specs=[
            pl.BlockSpec((pl.Squeezed(), P, Kp, L), lambda n: (n, 0, 0, 0)),
            pl.BlockSpec((P, Cout, Kp), lambda n: (0, 0, 0)),
        ],
        out_specs=pl.BlockSpec((pl.Squeezed(), P, Cout, L),
                               lambda n: (n, 0, 0, 0)),
        compiler_params=pltpu.CompilerParams(
            dimension_semantics=("parallel",)),
    )(patches, w_ph)


# ---------------------------------------------------------------------------
# Wrapper: phase-decomposed transposed conv -> Pallas kernel -> interleave
# ---------------------------------------------------------------------------
def upsample_forward(x, weight, bias, *, kernel_size, stride, padding,
                     output_padding):
    """x: (N, Cin, H, W); weight: (Cin, Cout, KH, KW) (ConvTranspose2d layout).

    Returns ReLU(InstanceNorm2d(conv_transpose2d(x, weight, bias))) in NCHW.
    `bias` is accepted for API parity but unused: InstanceNorm2d(affine=False)
    subtracts the per-(n, c) mean, which cancels a per-channel bias exactly.
    """
    del bias
    N, Cin, H, W = x.shape
    KH, KW = kernel_size
    SH, SW = stride
    PH, PW = padding
    OPH, OPW = output_padding
    Cout = weight.shape[1]
    OH = (H - 1) * SH - 2 * PH + KH + OPH
    OW = (W - 1) * SW - 2 * PW + KW + OPW

    # Fast path (stride-phase decomposition) needs uniform phases.  Otherwise
    # fall back to explicit zero-dilation with a single phase (stride -> 1);
    # the construction below then reduces to the classic dilate + im2col form.
    uniform = (KH % SH == 0 and KW % SW == 0 and OH % SH == 0 and OW % SW == 0)
    if not uniform:
        xd = jnp.zeros((N, Cin, (H - 1) * SH + 1, (W - 1) * SW + 1), x.dtype)
        x = xd.at[:, :, ::SH, ::SW].set(x)
        H, W = x.shape[2], x.shape[3]
        SH = SW = 1

    ph_lo = KH - 1 - PH
    pw_lo = KW - 1 - PW
    T, S = OH // SH, OW // SW          # per-phase output extent

    # For output phase p (oh = SH*t + p), only kernel taps kh with
    # (p + kh - ph_lo) % SH == 0 hit non-dilated input, and they read input
    # row t + d with d = (p + kh - ph_lo) // SH.  Same along W.
    row_taps = [[(kh, (p + kh - ph_lo) // SH) for kh in range(KH)
                 if (p + kh - ph_lo) % SH == 0] for p in range(SH)]
    col_taps = [[(kw, (q + kw - pw_lo) // SW) for kw in range(KW)
                 if (q + kw - pw_lo) % SW == 0] for q in range(SW)]
    r_offs = [d for taps in row_taps for _, d in taps]
    c_offs = [e for taps in col_taps for _, e in taps]
    pad_t = max(0, -min(r_offs))
    pad_b = max(0, T - 1 + max(r_offs) - (H - 1))
    pad_l = max(0, -min(c_offs))
    pad_r = max(0, S - 1 + max(c_offs) - (W - 1))
    xpad = jnp.pad(x, ((0, 0), (0, 0), (pad_t, pad_b), (pad_l, pad_r)))

    # Spatially flipped transposed-conv weight: wf[ci, co, kh, kw].
    wf = weight[:, :, ::-1, ::-1]

    # TODO(synk): per-phase patch extraction and the phase->NCHW interleave
    # stay in XLA; doing them in-kernel needs a (T, S) -> (T*S,) lane relayout
    # with no clean/cheap Mosaic primitive.
    patch_phases, w_phases = [], []
    for p in range(SH):
        for q in range(SW):
            slabs, wcols = [], []
            for kh, d in row_taps[p]:
                for kw, e in col_taps[q]:
                    r0, c0 = d + pad_t, e + pad_l
                    slabs.append(xpad[:, :, r0:r0 + T, c0:c0 + S])  # (N,Cin,T,S)
                    wcols.append(wf[:, :, kh, kw])                  # (Cin,Cout)
            ph = jnp.stack(slabs, axis=1)               # (N, ntap, Cin, T, S)
            patch_phases.append(ph.reshape(N, -1, T * S))
            wp = jnp.stack(wcols, axis=0)               # (ntap, Cin, Cout)
            w_phases.append(jnp.transpose(wp, (2, 0, 1)).reshape(Cout, -1))
    patches = jnp.stack(patch_phases, axis=1).astype(jnp.bfloat16)  # (N,P,Kp,L)
    w_ph = jnp.stack(w_phases, axis=0).astype(jnp.bfloat16)         # (P,Cout,Kp)

    out = _fused_matmul_norm_relu(patches, w_ph)        # (N, P, Cout, L) f32

    # Interleave: out[n, p*SW+q, co, t*S+s] -> NCHW[n, co, SH*t+p, SW*s+q]
    out = out.reshape(N, SH, SW, Cout, T, S)
    out = jnp.transpose(out, (0, 3, 4, 1, 5, 2))        # (N, Cout, T, SH, S, SW)
    return out.reshape(N, Cout, OH, OW)


# ---------------------------------------------------------------------------
# Pure-JAX reference (PyTorch-faithful, f32)
# ---------------------------------------------------------------------------
def upsample_reference(x, weight, bias, *, kernel_size, stride, padding,
                       output_padding):
    KH, KW = kernel_size
    SH, SW = stride
    PH, PW = padding
    OPH, OPW = output_padding
    w_conv = jnp.transpose(weight[:, :, ::-1, ::-1], (1, 0, 2, 3))  # (Cout,Cin,KH,KW)
    y = lax.conv_general_dilated(
        x.astype(jnp.float32), w_conv.astype(jnp.float32),
        window_strides=(1, 1),
        padding=[(KH - 1 - PH, KH - 1 - PH + OPH),
                 (KW - 1 - PW, KW - 1 - PW + OPW)],
        lhs_dilation=(SH, SW),
        dimension_numbers=("NCHW", "OIHW", "NCHW"))
    y = y + bias.reshape(1, -1, 1, 1)
    mean = jnp.mean(y, axis=(2, 3), keepdims=True)
    var = jnp.mean((y - mean) ** 2, axis=(2, 3), keepdims=True)
    return jnp.maximum((y - mean) * lax.rsqrt(var + 1e-5), 0.0)


if __name__ == "__main__":
    # Module config: Upsample(in_channel=4, out_channel=8, kernel_size=(4,4),
    #                         stride=(2,2), padding=(1,1))
    N, Cin, H, W = 2, 4, 16, 16
    Cout = 8
    kernel_size = (4, 4)
    stride = (2, 2)
    padding = (1, 1)
    output_padding = (0, 0)

    key = jax.random.PRNGKey(0)
    kx, kw, kb = jax.random.split(key, 3)
    x = jax.random.normal(kx, (N, Cin, H, W), dtype=jnp.float32)
    # ConvTranspose2d weight layout: (in_channel, out_channel, KH, KW)
    weight = 0.1 * jax.random.normal(
        kw, (Cin, Cout, kernel_size[0], kernel_size[1]), dtype=jnp.float32)
    bias = 0.1 * jax.random.normal(kb, (Cout,), dtype=jnp.float32)

    fwd = functools.partial(upsample_forward, kernel_size=kernel_size,
                            stride=stride, padding=padding,
                            output_padding=output_padding)
    out = jax.block_until_ready(jax.jit(fwd)(x, weight, bias))

    OH = (H - 1) * 2 - 2 + 4
    OW = (W - 1) * 2 - 2 + 4
    assert out.shape == (N, Cout, OH, OW)

    # Tight check: reference with operands rounded to bf16 (f32 math) matches
    # the kernel's bf16-input / f32-accumulation matmul.
    xb = x.astype(jnp.bfloat16).astype(jnp.float32)
    wb = weight.astype(jnp.bfloat16).astype(jnp.float32)
    ref_bf = upsample_reference(xb, wb, bias, kernel_size=kernel_size,
                                stride=stride, padding=padding,
                                output_padding=output_padding)
    assert jnp.allclose(out, ref_bf, atol=2e-3, rtol=2e-3), \
        "mismatch vs matched-precision reference"

    # Loose check vs the full-f32 reference (bf16 input rounding only).
    ref_f32 = upsample_reference(x, weight, bias, kernel_size=kernel_size,
                                 stride=stride, padding=padding,
                                 output_padding=output_padding)
    assert jnp.allclose(out, ref_f32, atol=5e-2, rtol=5e-2), \
        "mismatch vs f32 reference"

    print("KERNEL_OK")
</pallas_src>

<mosaic_0001>
module attributes {stable_mosaic.version = 11 : i64} {
  func.func @_upsample_kernel(%arg0: i32, %arg1: memref<1x4x16x256xbf16, #tpu.memory_space<vmem>>, %arg2: memref<4x8x16xbf16, #tpu.memory_space<vmem>>, %arg3: memref<1x4x8x256xf32, #tpu.memory_space<vmem>>) attributes {dimension_semantics = [#tpu.dimension_semantics<parallel>], iteration_bounds = array<i64: 2>, scalar_prefetch = 0 : i64, scratch_operands = 0 : i64, tpu.core_type = #tpu.core_type<tc>, window_params = [{transform_indices = @transform_0, window_bounds = array<i64: 1, 4, 16, 256>}, {pipeline_mode = #tpu.pipeline_mode<synchronous>, transform_indices = @transform_1, window_bounds = array<i64: 4, 8, 16>}, {transform_indices = @transform_2, window_bounds = array<i64: 1, 4, 8, 256>}]} {
    %cst = arith.constant 0.000000e+00 : f32
    %0 = vector.broadcast %cst : f32 to vector<8x1xf32>
    %cst_0 = arith.constant 0.000000e+00 : f32
    %1 = vector.broadcast %cst_0 : f32 to vector<8x1xf32>
    %c0 = arith.constant 0 : index
    %c0_1 = arith.constant 0 : index
    %c0_2 = arith.constant 0 : index
    %2 = vector.load %arg2[%c0, %c0_1, %c0_2] : memref<4x8x16xbf16, #tpu.memory_space<vmem>>, vector<1x8x16xbf16>
    %3 = vector.shape_cast %2 : vector<1x8x16xbf16> to vector<8x16xbf16>
    %c0_3 = arith.constant 0 : index
    %c0_4 = arith.constant 0 : index
    %c0_5 = arith.constant 0 : index
    %c0_6 = arith.constant 0 : index
    %4 = vector.load %arg1[%c0_3, %c0_4, %c0_5, %c0_6] : memref<1x4x16x256xbf16, #tpu.memory_space<vmem>>, vector<1x1x16x256xbf16>
    %5 = vector.shape_cast %4 : vector<1x1x16x256xbf16> to vector<16x256xbf16>
    %cst_7 = arith.constant dense<0.000000e+00> : vector<8x256xf32>
    %6 = tpu.matmul %3, %5, %cst_7 {dimension_numbers = #tpu.dot_dimension_numbers<[1], [0], [0], [1], [0, 0, 1, 1], [], []>} : vector<8x16xbf16>, vector<16x256xbf16>, vector<8x256xf32> -> vector<8x256xf32>
    %c0_8 = arith.constant 0 : index
    %c0_9 = arith.constant 0 : index
    %c0_10 = arith.constant 0 : index
    %c0_11 = arith.constant 0 : index
    %7 = vector.load %arg3[%c0_8, %c0_9, %c0_10, %c0_11] : memref<1x4x8x256xf32, #tpu.memory_space<vmem>>, vector<1x1x8x256xf32>
    %8 = vector.shape_cast %7 : vector<1x1x8x256xf32> to vector<8x256xf32>
    %9 = vector.shape_cast %6 : vector<8x256xf32> to vector<1x1x8x256xf32>
    tpu.vector_store %arg3[%c0_8, %c0_9, %c0_10, %c0_11], %9 {strides = array<i32>} : memref<1x4x8x256xf32, #tpu.memory_space<vmem>>, vector<1x1x8x256xf32>,
    %cst_12 = arith.constant dense<0.000000e+00> : vector<8xf32>
    %10 = vector.multi_reduction <add>, %6, %cst_12 [1] : vector<8x256xf32> to vector<8xf32>
    %11 = vector.shape_cast %10 : vector<8xf32> to vector<8x1xf32>
    %12 = arith.addf %0, %11 : vector<8x1xf32>
    %13 = arith.mulf %6, %6 : vector<8x256xf32>
    %cst_13 = arith.constant dense<0.000000e+00> : vector<8xf32>
    %14 = vector.multi_reduction <add>, %13, %cst_13 [1] : vector<8x256xf32> to vector<8xf32>
    %15 = vector.shape_cast %14 : vector<8xf32> to vector<8x1xf32>
    %16 = arith.addf %1, %15 : vector<8x1xf32>
    %c1 = arith.constant 1 : index
    %c0_14 = arith.constant 0 : index
    %c0_15 = arith.constant 0 : index
    %17 = vector.load %arg2[%c1, %c0_14, %c0_15] : memref<4x8x16xbf16, #tpu.memory_space<vmem>>, vector<1x8x16xbf16>
    %18 = vector.shape_cast %17 : vector<1x8x16xbf16> to vector<8x16xbf16>
    %c0_16 = arith.constant 0 : index
    %c1_17 = arith.constant 1 : index
    %c0_18 = arith.constant 0 : index
    %c0_19 = arith.constant 0 : index
    %19 = vector.load %arg1[%c0_16, %c1_17, %c0_18, %c0_19] : memref<1x4x16x256xbf16, #tpu.memory_space<vmem>>, vector<1x1x16x256xbf16>
    %20 = vector.shape_cast %19 : vector<1x1x16x256xbf16> to vector<16x256xbf16>
    %cst_20 = arith.constant dense<0.000000e+00> : vector<8x256xf32>
    %21 = tpu.matmul %18, %20, %cst_20 {dimension_numbers = #tpu.dot_dimension_numbers<[1], [0], [0], [1], [0, 0, 1, 1], [], []>} : vector<8x16xbf16>, vector<16x256xbf16>, vector<8x256xf32> -> vector<8x256xf32>
    %c0_21 = arith.constant 0 : index
    %c1_22 = arith.constant 1 : index
    %c0_23 = arith.constant 0 : index
    %c0_24 = arith.constant 0 : index
    %22 = vector.load %arg3[%c0_21, %c1_22, %c0_23, %c0_24] : memref<1x4x8x256xf32, #tpu.memory_space<vmem>>, vector<1x1x8x256xf32>
    %23 = vector.shape_cast %22 : vector<1x1x8x256xf32> to vector<8x256xf32>
    %24 = vector.shape_cast %21 : vector<8x256xf32> to vector<1x1x8x256xf32>
    tpu.vector_store %arg3[%c0_21, %c1_22, %c0_23, %c0_24], %24 {strides = array<i32>} : memref<1x4x8x256xf32, #tpu.memory_space<vmem>>, vector<1x1x8x256xf32>,
    %cst_25 = arith.constant dense<0.000000e+00> : vector<8xf32>
    %25 = vector.multi_reduction <add>, %21, %cst_25 [1] : vector<8x256xf32> to vector<8xf32>
    %26 = vector.shape_cast %25 : vector<8xf32> to vector<8x1xf32>
    %27 = arith.addf %12, %26 : vector<8x1xf32>
    %28 = arith.mulf %21, %21 : vector<8x256xf32>
    %cst_26 = arith.constant dense<0.000000e+00> : vector<8xf32>
    %29 = vector.multi_reduction <add>, %28, %cst_26 [1] : vector<8x256xf32> to vector<8xf32>
    %30 = vector.shape_cast %29 : vector<8xf32> to vector<8x1xf32>
    %31 = arith.addf %16, %30 : vector<8x1xf32>
    %c2 = arith.constant 2 : index
    %c0_27 = arith.constant 0 : index
    %c0_28 = arith.constant 0 : index
    %32 = vector.load %arg2[%c2, %c0_27, %c0_28] : memref<4x8x16xbf16, #tpu.memory_space<vmem>>, vector<1x8x16xbf16>
    %33 = vector.shape_cast %32 : vector<1x8x16xbf16> to vector<8x16xbf16>
    %c0_29 = arith.constant 0 : index
    %c2_30 = arith.constant 2 : index
    %c0_31 = arith.constant 0 : index
    %c0_32 = arith.constant 0 : index
    %34 = vector.load %arg1[%c0_29, %c2_30, %c0_31, %c0_32] : memref<1x4x16x256xbf16, #tpu.memory_space<vmem>>, vector<1x1x16x256xbf16>
    %35 = vector.shape_cast %34 : vector<1x1x16x256xbf16> to vector<16x256xbf16>
    %cst_33 = arith.constant dense<0.000000e+00> : vector<8x256xf32>
    %36 = tpu.matmul %33, %35, %cst_33 {dimension_numbers = #tpu.dot_dimension_numbers<[1], [0], [0], [1], [0, 0, 1, 1], [], []>} : vector<8x16xbf16>, vector<16x256xbf16>, vector<8x256xf32> -> vector<8x256xf32>
    %c0_34 = arith.constant 0 : index
    %c2_35 = arith.constant 2 : index
    %c0_36 = arith.constant 0 : index
    %c0_37 = arith.constant 0 : index
    %37 = vector.load %arg3[%c0_34, %c2_35, %c0_36, %c0_37] : memref<1x4x8x256xf32, #tpu.memory_space<vmem>>, vector<1x1x8x256xf32>
    %38 = vector.shape_cast %37 : vector<1x1x8x256xf32> to vector<8x256xf32>
    %39 = vector.shape_cast %36 : vector<8x256xf32> to vector<1x1x8x256xf32>
    tpu.vector_store %arg3[%c0_34, %c2_35, %c0_36, %c0_37], %39 {strides = array<i32>} : memref<1x4x8x256xf32, #tpu.memory_space<vmem>>, vector<1x1x8x256xf32>,
    %cst_38 = arith.constant dense<0.000000e+00> : vector<8xf32>
    %40 = vector.multi_reduction <add>, %36, %cst_38 [1] : vector<8x256xf32> to vector<8xf32>
    %41 = vector.shape_cast %40 : vector<8xf32> to vector<8x1xf32>
    %42 = arith.addf %27, %41 : vector<8x1xf32>
    %43 = arith.mulf %36, %36 : vector<8x256xf32>
    %cst_39 = arith.constant dense<0.000000e+00> : vector<8xf32>
    %44 = vector.multi_reduction <add>, %43, %cst_39 [1] : vector<8x256xf32> to vector<8xf32>
    %45 = vector.shape_cast %44 : vector<8xf32> to vector<8x1xf32>
    %46 = arith.addf %31, %45 : vector<8x1xf32>
    %c3 = arith.constant 3 : index
    %c0_40 = arith.constant 0 : index
    %c0_41 = arith.constant 0 : index
    %47 = vector.load %arg2[%c3, %c0_40, %c0_41] : memref<4x8x16xbf16, #tpu.memory_space<vmem>>, vector<1x8x16xbf16>
    %48 = vector.shape_cast %47 : vector<1x8x16xbf16> to vector<8x16xbf16>
    %c0_42 = arith.constant 0 : index
    %c3_43 = arith.constant 3 : index
    %c0_44 = arith.constant 0 : index
    %c0_45 = arith.constant 0 : index
    %49 = vector.load %arg1[%c0_42, %c3_43, %c0_44, %c0_45] : memref<1x4x16x256xbf16, #tpu.memory_space<vmem>>, vector<1x1x16x256xbf16>
    %50 = vector.shape_cast %49 : vector<1x1x16x256xbf16> to vector<16x256xbf16>
    %cst_46 = arith.constant dense<0.000000e+00> : vector<8x256xf32>
    %51 = tpu.matmul %48, %50, %cst_46 {dimension_numbers = #tpu.dot_dimension_numbers<[1], [0], [0], [1], [0, 0, 1, 1], [], []>} : vector<8x16xbf16>, vector<16x256xbf16>, vector<8x256xf32> -> vector<8x256xf32>
    %c0_47 = arith.constant 0 : index
    %c3_48 = arith.constant 3 : index
    %c0_49 = arith.constant 0 : index
    %c0_50 = arith.constant 0 : index
    %52 = vector.load %arg3[%c0_47, %c3_48, %c0_49, %c0_50] : memref<1x4x8x256xf32, #tpu.memory_space<vmem>>, vector<1x1x8x256xf32>
    %53 = vector.shape_cast %52 : vector<1x1x8x256xf32> to vector<8x256xf32>
    %54 = vector.shape_cast %51 : vector<8x256xf32> to vector<1x1x8x256xf32>
    tpu.vector_store %arg3[%c0_47, %c3_48, %c0_49, %c0_50], %54 {strides = array<i32>} : memref<1x4x8x256xf32, #tpu.memory_space<vmem>>, vector<1x1x8x256xf32>,
    %cst_51 = arith.constant dense<0.000000e+00> : vector<8xf32>
    %55 = vector.multi_reduction <add>, %51, %cst_51 [1] : vector<8x256xf32> to vector<8xf32>
    %56 = vector.shape_cast %55 : vector<8xf32> to vector<8x1xf32>
    %57 = arith.addf %42, %56 : vector<8x1xf32>
    %58 = arith.mulf %51, %51 : vector<8x256xf32>
    %cst_52 = arith.constant dense<0.000000e+00> : vector<8xf32>
    %59 = vector.multi_reduction <add>, %58, %cst_52 [1] : vector<8x256xf32> to vector<8xf32>
    %60 = vector.shape_cast %59 : vector<8xf32> to vector<8x1xf32>
    %61 = arith.addf %46, %60 : vector<8x1xf32>
    %cst_53 = arith.constant 9.765625E-4 : f32
    %62 = vector.broadcast %cst_53 : f32 to vector<8x1xf32>
    %63 = arith.mulf %57, %62 : vector<8x1xf32>
    %cst_54 = arith.constant 9.765625E-4 : f32
    %64 = vector.broadcast %cst_54 : f32 to vector<8x1xf32>
    %65 = arith.mulf %61, %64 : vector<8x1xf32>
    %66 = arith.mulf %63, %63 : vector<8x1xf32>
    %67 = arith.subf %65, %66 : vector<8x1xf32>
    %cst_55 = arith.constant 0.000000e+00 : f32
    %68 = vector.broadcast %cst_55 : f32 to vector<8x1xf32>
    %69 = arith.maximumf %67, %68 : vector<8x1xf32>
    %cst_56 = arith.constant 9.99999974E-6 : f32
    %70 = vector.broadcast %cst_56 : f32 to vector<8x1xf32>
    %71 = arith.addf %69, %70 : vector<8x1xf32>
    %72 = math.rsqrt %71 : vector<8x1xf32>
    %c0_57 = arith.constant 0 : index
    %c0_58 = arith.constant 0 : index
    %c0_59 = arith.constant 0 : index
    %c0_60 = arith.constant 0 : index
    %73 = vector.load %arg3[%c0_57, %c0_58, %c0_59, %c0_60] : memref<1x4x8x256xf32, #tpu.memory_space<vmem>>, vector<1x1x8x256xf32>
    %74 = vector.shape_cast %73 : vector<1x1x8x256xf32> to vector<8x256xf32>
    %75 = vector.broadcast %63 : vector<8x1xf32> to vector<8x256xf32>
    %76 = arith.subf %74, %75 : vector<8x256xf32>
    %77 = vector.broadcast %72 : vector<8x1xf32> to vector<8x256xf32>
    %78 = arith.mulf %76, %77 : vector<8x256xf32>
    %cst_61 = arith.constant 0.000000e+00 : f32
    %79 = vector.broadcast %cst_61 : f32 to vector<8x256xf32>
    %80 = arith.maximumf %78, %79 : vector<8x256xf32>
    %c0_62 = arith.constant 0 : index
    %c0_63 = arith.constant 0 : index
    %c0_64 = arith.constant 0 : index
    %c0_65 = arith.constant 0 : index
    %81 = vector.load %arg3[%c0_62, %c0_63, %c0_64, %c0_65] : memref<1x4x8x256xf32, #tpu.memory_space<vmem>>, vector<1x1x8x256xf32>
    %82 = vector.shape_cast %81 : vector<1x1x8x256xf32> to vector<8x256xf32>
    %83 = vector.shape_cast %80 : vector<8x256xf32> to vector<1x1x8x256xf32>
    tpu.vector_store %arg3[%c0_62, %c0_63, %c0_64, %c0_65], %83 {strides = array<i32>} : memref<1x4x8x256xf32, #tpu.memory_space<vmem>>, vector<1x1x8x256xf32>,
    %c0_66 = arith.constant 0 : index
    %c1_67 = arith.constant 1 : index
    %c0_68 = arith.constant 0 : index
    %c0_69 = arith.constant 0 : index
    %84 = vector.load %arg3[%c0_66, %c1_67, %c0_68, %c0_69] : memref<1x4x8x256xf32, #tpu.memory_space<vmem>>, vector<1x1x8x256xf32>
    %85 = vector.shape_cast %84 : vector<1x1x8x256xf32> to vector<8x256xf32>
    %86 = vector.broadcast %63 : vector<8x1xf32> to vector<8x256xf32>
    %87 = arith.subf %85, %86 : vector<8x256xf32>
    %88 = vector.broadcast %72 : vector<8x1xf32> to vector<8x256xf32>
    %89 = arith.mulf %87, %88 : vector<8x256xf32>
    %cst_70 = arith.constant 0.000000e+00 : f32
    %90 = vector.broadcast %cst_70 : f32 to vector<8x256xf32>
    %91 = arith.maximumf %89, %90 : vector<8x256xf32>
    %c0_71 = arith.constant 0 : index
    %c1_72 = arith.constant 1 : index
    %c0_73 = arith.constant 0 : index
    %c0_74 = arith.constant 0 : index
    %92 = vector.load %arg3[%c0_71, %c1_72, %c0_73, %c0_74] : memref<1x4x8x256xf32, #tpu.memory_space<vmem>>, vector<1x1x8x256xf32>
    %93 = vector.shape_cast %92 : vector<1x1x8x256xf32> to vector<8x256xf32>
    %94 = vector.shape_cast %91 : vector<8x256xf32> to vector<1x1x8x256xf32>
    tpu.vector_store %arg3[%c0_71, %c1_72, %c0_73, %c0_74], %94 {strides = array<i32>} : memref<1x4x8x256xf32, #tpu.memory_space<vmem>>, vector<1x1x8x256xf32>,
    %c0_75 = arith.constant 0 : index
    %c2_76 = arith.constant 2 : index
    %c0_77 = arith.constant 0 : index
    %c0_78 = arith.constant 0 : index
    %95 = vector.load %arg3[%c0_75, %c2_76, %c0_77, %c0_78] : memref<1x4x8x256xf32, #tpu.memory_space<vmem>>, vector<1x1x8x256xf32>
    %96 = vector.shape_cast %95 : vector<1x1x8x256xf32> to vector<8x256xf32>
    %97 = vector.broadcast %63 : vector<8x1xf32> to vector<8x256xf32>
    %98 = arith.subf %96, %97 : vector<8x256xf32>
    %99 = vector.broadcast %72 : vector<8x1xf32> to vector<8x256xf32>
    %100 = arith.mulf %98, %99 : vector<8x256xf32>
    %cst_79 = arith.constant 0.000000e+00 : f32
    %101 = vector.broadcast %cst_79 : f32 to vector<8x256xf32>
    %102 = arith.maximumf %100, %101 : vector<8x256xf32>
    %c0_80 = arith.constant 0 : index
    %c2_81 = arith.constant 2 : index
    %c0_82 = arith.constant 0 : index
    %c0_83 = arith.constant 0 : index
    %103 = vector.load %arg3[%c0_80, %c2_81, %c0_82, %c0_83] : memref<1x4x8x256xf32, #tpu.memory_space<vmem>>, vector<1x1x8x256xf32>
    %104 = vector.shape_cast %103 : vector<1x1x8x256xf32> to vector<8x256xf32>
    %105 = vector.shape_cast %102 : vector<8x256xf32> to vector<1x1x8x256xf32>
    tpu.vector_store %arg3[%c0_80, %c2_81, %c0_82, %c0_83], %105 {strides = array<i32>} : memref<1x4x8x256xf32, #tpu.memory_space<vmem>>, vector<1x1x8x256xf32>,
    %c0_84 = arith.constant 0 : index
    %c3_85 = arith.constant 3 : index
    %c0_86 = arith.constant 0 : index
    %c0_87 = arith.constant 0 : index
    %106 = vector.load %arg3[%c0_84, %c3_85, %c0_86, %c0_87] : memref<1x4x8x256xf32, #tpu.memory_space<vmem>>, vector<1x1x8x256xf32>
    %107 = vector.shape_cast %106 : vector<1x1x8x256xf32> to vector<8x256xf32>
    %108 = vector.broadcast %63 : vector<8x1xf32> to vector<8x256xf32>
    %109 = arith.subf %107, %108 : vector<8x256xf32>
    %110 = vector.broadcast %72 : vector<8x1xf32> to vector<8x256xf32>
    %111 = arith.mulf %109, %110 : vector<8x256xf32>
    %cst_88 = arith.constant 0.000000e+00 : f32
    %112 = vector.broadcast %cst_88 : f32 to vector<8x256xf32>
    %113 = arith.maximumf %111, %112 : vector<8x256xf32>
    %c0_89 = arith.constant 0 : index
    %c3_90 = arith.constant 3 : index
    %c0_91 = arith.constant 0 : index
    %c0_92 = arith.constant 0 : index
    %114 = vector.load %arg3[%c0_89, %c3_90, %c0_91, %c0_92] : memref<1x4x8x256xf32, #tpu.memory_space<vmem>>, vector<1x1x8x256xf32>
    %115 = vector.shape_cast %114 : vector<1x1x8x256xf32> to vector<8x256xf32>
    %116 = vector.shape_cast %113 : vector<8x256xf32> to vector<1x1x8x256xf32>
    tpu.vector_store %arg3[%c0_89, %c3_90, %c0_91, %c0_92], %116 {strides = array<i32>} : memref<1x4x8x256xf32, #tpu.memory_space<vmem>>, vector<1x1x8x256xf32>,
    return
  }
  func.func @transform_0(%arg0: i32) -> (i32, i32, i32, i32) {
    %c0_i32 = arith.constant 0 : i32
    %c0_i32_0 = arith.constant 0 : i32
    %c0_i32_1 = arith.constant 0 : i32
    %c0_i32_2 = arith.constant 0 : i32
    return %arg0, %c0_i32, %c0_i32_0, %c0_i32_1 : i32, i32, i32, i32
  }
  func.func @transform_1(%arg0: i32) -> (i32, i32, i32) {
    %c0_i32 = arith.constant 0 : i32
    %c0_i32_0 = arith.constant 0 : i32
    %c0_i32_1 = arith.constant 0 : i32
    %c0_i32_2 = arith.constant 0 : i32
    return %c0_i32, %c0_i32_0, %c0_i32_1 : i32, i32, i32
  }
  func.func @transform_2(%arg0: i32) -> (i32, i32, i32, i32) {
    %c0_i32 = arith.constant 0 : i32
    %c0_i32_0 = arith.constant 0 : i32
    %c0_i32_1 = arith.constant 0 : i32
    %c0_i32_2 = arith.constant 0 : i32
    return %arg0, %c0_i32, %c0_i32_0, %c0_i32_1 : i32, i32, i32, i32
  }
}

</mosaic_0001>

<llo_original>
// kernel: upsample_forward.1
$region0: #{upsample_forward.1}
  #allocation0 [shape = 'u32[]', space=smem, size = 0x4, offset = 0x4, fixed_abs, tag = 'smem constant byte address 0x4 - core index']
  #allocation1 [shape = 'u32[144,128]{1,0:T(1,128)}', space=vmem, size = 0x12000, scoped, tag = 'internal scratch']
  %s0 = inlined_call_operand.vmem [shape: bf16[2,4,16,256], index: 0, kind: input, shape index: {}]
  %s1 = inlined_call_operand.vmem [shape: bf16[4,8,16], index: 1, kind: input, shape index: {}]
  %s2 = inlined_call_operand.vmem [shape: f32[2,4,8,256], index: 2, kind: output, shape index: {}]
  %s3 = sld [smem:[#allocation0]]
  $region41: #{upsample_forward.1} parent=0
    _
  %s5 = ssub.s32 1, %s3
  %s6 = scalar_select 0, %s5, %s3
  loop: start=0, step=1, limit=4
  $region2: #{upsample_forward.1} parent=0 // loop_pre_header
    _
  $region3: #{upsample_forward.1} parent=0 // loop_header
    %s8 = sphi 0, %s12
    %p9 = scmp.ge.s32.totalorder %s8, 4
    %s18 = sphi 0, %s20
    %s21 = sphi 0, %s18
    %s22 = sphi 0, %s21
    %s38 = sphi 0, %s22
    %s42 = sphi 0, %s42
    %s44 = sphi 0, %s42
    %s45 = sphi 0, %s44
    %s59 = sphi 0, %s45
    %s65 = sphi 0, %s67
    %s68 = sphi 0, %s65
    %s69 = sphi 0, %s68
    %s85 = sphi 0, %s69
  $region4: #{upsample_forward.1} parent=0 // loop_header_branch
    %11 = sbr.rel (%p9) target = $region8
  $region5: #{upsample_forward.1} parent=0 // loop_body
    %s13 = ssub.s32 %s8, 1
    %s14 = ssub.s32 %s8, 2
    %s15 = sadd.s32 %s8, 1
    %s16 = ssub.s32 %s8, %s15
    %p17 = scmp.eq.s32.totalorder %s16, 0
    %s19 = sadd.s32 %s18, 1
    %s20 = scalar_select %p17, %s18, %s19
    %p23 = pneg %p17
    %p24 = scmp.eq.s32.totalorder %s8, 1
    %p25 = por %p23, %p24
    %p26 = scmp.ne.s32.totalorder %s18, %s21
    %p27 = scmp.eq.s32.totalorder %s8, 0
    %p28 = por %p26, %p27
    %p29 = scmp.ne.s32.totalorder %s18, %s21
    %p30 = scmp.eq.s32.totalorder %s13, 1
    %p31 = por %p29, %p30
    %p32 = scmp.ne.s32.totalorder %s21, %s22
    %p33 = scmp.eq.s32.totalorder %s13, 0
    %p34 = por %p32, %p33
    %p35 = scmp.ne.s32.totalorder %s21, %s22
    %p36 = scmp.eq.s32.totalorder %s14, 1
    %p37 = por %p35, %p36
    %p39 = scmp.ne.s32.totalorder %s22, %s38
    %p40 = scmp.eq.s32.totalorder %s14, 0
    %p41 = por %p39, %p40
    %s43 = sadd.s32 %s42, 1
    %p46 = scmp.eq.s32.totalorder %s8, 1
    %p47 = scmp.ne.s32.totalorder %s42, %s44
    %p48 = scmp.eq.s32.totalorder %s8, 0
    %p49 = por %p47, %p48
    %p50 = scmp.ne.s32.totalorder %s42, %s44
    %p51 = scmp.eq.s32.totalorder %s13, 1
    %p52 = por %p50, %p51
    %p53 = scmp.ne.s32.totalorder %s44, %s45
    %p54 = scmp.eq.s32.totalorder %s13, 0
    %p55 = por %p53, %p54
    %p56 = scmp.ne.s32.totalorder %s44, %s45
    %p57 = scmp.eq.s32.totalorder %s14, 1
    %p58 = por %p56, %p57
    %p60 = scmp.ne.s32.totalorder %s45, %s59
    %p61 = scmp.eq.s32.totalorder %s14, 0
    %p62 = por %p60, %p61
    %s63 = ssub.s32 %s8, %s15
    %p64 = scmp.eq.s32.totalorder %s63, 0
    %s66 = sadd.s32 %s65, 1
    %s67 = scalar_select %p64, %s65, %s66
    %p70 = pneg %p64
    %p71 = scmp.eq.s32.totalorder %s8, 1
    %p72 = por %p70, %p71
    %p73 = scmp.ne.s32.totalorder %s65, %s68
    %p74 = scmp.eq.s32.totalorder %s8, 0
    %p75 = por %p73, %p74
    %p76 = scmp.ne.s32.totalorder %s65, %s68
    %p77 = scmp.eq.s32.totalorder %s13, 1
    %p78 = por %p76, %p77
    %p79 = scmp.ne.s32.totalorder %s68, %s69
    %p80 = scmp.eq.s32.totalorder %s13, 0
    %p81 = por %p79, %p80
    %p82 = scmp.ne.s32.totalorder %s68, %s69
    %p83 = scmp.eq.s32.totalorder %s14, 1
    %p84 = por %p82, %p83
    %p86 = scmp.ne.s32.totalorder %s69, %s85
    %p87 = scmp.eq.s32.totalorder %s14, 0
    %p88 = por %p86, %p87
    %p89 = scmp.le.s32.totalorder 1, %s8
    %p90 = scmp.lt.s32.totalorder %s8, 3
    %p91 = pnand %p89, %p90
    %p92 = pneg %p91
    // Predicated region
    $region9: #{upsample_forward.1} parent=5 // pred_check
      _
    $region10: #{upsample_forward.1} parent=5 // pred_check_branch
      %94 = sbr.rel (%p91) target = $region12
    $region11: #{upsample_forward.1} parent=5 // pred_region
      %s95 = ssub.s32 %s8, 1
      // Predicated region
      $region13: #{upsample_forward.1} parent=11 // pred_check
        %p96 = pneg %p55
      $region14: #{upsample_forward.1} parent=11 // pred_check_branch
        %98 = sbr.rel (%p96) target = $region16
      $region15: #{upsample_forward.1} parent=11 // pred_region
        _
      $region16: #{upsample_forward.1} parent=11 // pred_fallthru
        _
    $region12: #{upsample_forward.1} parent=5 // pred_fallthru
      _
    %p99 = scmp.lt.s32.totalorder %s8, 2
    // Predicated region
    $region17: #{upsample_forward.1} parent=5 // pred_check
      %p100 = pneg %p99
    $region18: #{upsample_forward.1} parent=5 // pred_check_branch
      %102 = sbr.rel (%p100) target = $region20
    $region19: #{upsample_forward.1} parent=5 // pred_region
      // Predicated region
      $region21: #{upsample_forward.1} parent=19 // pred_check
        %p103 = pneg %p28
      $region22: #{upsample_forward.1} parent=19 // pred_check_branch
        %105 = sbr.rel (%p103) target = $region24
      $region23: #{upsample_forward.1} parent=19 // pred_region
        %p106 = scmp.lt.s32.totalorder %s8, 1
        %s107 = scalar_select %p106, %s8, 1
        %s108 = smul.addr %s107, 16
        %s109 = smul.addr %s108, 4
        %s110 = scalar_lea.vmem %s0, %s109
      $region24: #{upsample_forward.1} parent=19 // pred_fallthru
        _
    $region20: #{upsample_forward.1} parent=5 // pred_fallthru
      _
    %p111 = scmp.le.s32.totalorder 1, %s8
    %p112 = scmp.lt.s32.totalorder %s8, 3
    %p113 = pnand %p111, %p112
    %p114 = pneg %p113
    // Predicated region
    $region25: #{upsample_forward.1} parent=5 // pred_check
      _
    $region26: #{upsample_forward.1} parent=5 // pred_check_branch
      %116 = sbr.rel (%p113) target = $region28
    $region27: #{upsample_forward.1} parent=5 // pred_region
      %s117 = ssub.s32 %s8, 1
      %p118 = scmp.lt.s32.totalorder %s13, 1
      %s119 = scalar_select %p118, %s13, 1
      %s120 = smul.addr %s119, 16
      %s121 = smul.addr %s120, 4
      %s122 = scalar_lea.vmem %s0, %s121
      %p123 = pneg %p34
      %p124 = pneg %p31
      %p125 = pneg %p55
      %p126 = pneg %p52
      %p127 = pneg %p81
      %p128 = pneg %p78
      %p129 = scmp.lt.s32.totalorder %s13, 1
      %s130 = scalar_select %p129, %s13, 1
      %s131 = smul.addr %s130, 8
      %s132 = smul.addr %s131, 8
      %s133 = scalar_lea.vmem %s2, %s132
      %p134 = scmp.lt.s32.totalorder %s13, 1
      %s135 = scalar_select %p134, %s13, 1
      %s136 = smul.addr %s135, 16
      %s137 = smul.addr %s136, 4
      %s138 = scalar_lea.vmem %s0, %s137
      %p139 = scmp.lt.s32.totalorder %s13, 1
      %s140 = scalar_select %p139, %s13, 1
      %s141 = smul.addr %s140, 8
      %s142 = smul.addr %s141, 8
      %s143 = scalar_lea.vmem %s2, %s142
      %v145 = vld [vmem:[%s1] sm:$0xf]
      %v146 = vld [vmem:[%s138] sm:$0xff]
      %v147 = vld [vmem:[%s138 + $0x8] sm:$0xff]
      %v150 = vunpack.c.l.b16 %v146
      %v151 = vunpack.c.h.b16 %v146
      %v152 = vunpack.c.l.b16 %v147
      %v153 = vunpack.c.h.b16 %v147
      %v154 = vpack.c.b16 %v152, %v150
      %v155 = vpack.c.b16 %v153, %v151
      %vm158 = vcmask 130048
      %v160 = vsel %vm158, %v145, 0
      %162 = vmatprep.subr.bf16.mxu0 %v155
      %163 = vmatpush1.bf16.msra.mxu0 %v154
      %164 = vmatprep.subr.bf16.mxu0 0
      %165 = vmatpush1.bf16.msra.mxu0 0
      %166 = vmatprep.subr.bf16.mxu0 0
      %167 = vmatpush1.bf16.msra.mxu0 0
      %168 = vmatprep.subr.bf16.mxu0 0
      %169 = vmatpush1.bf16.msra.mxu0 0
      %170 = vmatprep.subr.bf16.mxu0 0
      %171 = vmatpush1.bf16.msra.mxu0 0
      %172 = vmatprep.subr.bf16.mxu0 0
      %173 = vmatpush1.bf16.msra.mxu0 0
      %174 = vmatprep.subr.bf16.mxu0 0
      %175 = vmatpush1.bf16.msra.mxu0 0
      %176 = vmatprep.subr.bf16.mxu0 0
      %177 = vmatpush1.bf16.msra.mxu0 0
      %178 = vmatprep.subr.bf16.mxu0 0
      %179 = vmatpush1.bf16.msra.mxu0 0
      %180 = vmatprep.subr.bf16.mxu0 0
      %181 = vmatpush1.bf16.msra.mxu0 0
      %182 = vmatprep.subr.bf16.mxu0 0
      %183 = vmatpush1.bf16.msra.mxu0 0
      %184 = vmatprep.subr.bf16.mxu0 0
      %185 = vmatpush1.bf16.msra.mxu0 0
      %186 = vmatprep.subr.bf16.mxu0 0
      %187 = vmatpush1.bf16.msra.mxu0 0
      %188 = vmatprep.subr.bf16.mxu0 0
      %189 = vmatpush1.bf16.msra.mxu0 0
      %190 = vmatprep.subr.bf16.mxu0 0
      %191 = vmatpush1.bf16.msra.mxu0 0
      %192 = vmatprep.subr.bf16.mxu0 0
      %193 = vmatpush1.bf16.msra.mxu0 0
      %194 = vmatprep.mubr.bf16.mxu0 0
      %195 = vmatmul.mubr.bf16.gmra.mrb[0].mxu0 %v160
      %v196 = vpop.f32.mrb[0].mxu0
      %v197 = vadd.f32 0.0, %v196
      %v198 = vpop.f32.mrb[0].mxu0
      %v199 = vadd.f32 0.0, %v198
      %v200 = vpop.f32.mrb[0].mxu0
      %v201 = vpop.f32.mrb[0].mxu0
      %202 = vdwg.mxu0
      %203 = vst [vmem:[%s143] sm:$0xff] %v197
      %204 = vst [vmem:[%s143 + $0x8] sm:$0xff] %v199
      %v205 = vadd.f32 %v197, %v199
      %206 = vadd.xlane.f32.xlu0 %v205
      %v207 = vpop.xlane.xlu0 %206
      %v208 = vadd.f32 %v207, 0.0
      %v209 = vmul.f32 %v197, %v197
      %v210 = vmul.f32 %v199, %v199
      %v211 = vadd.f32 %v209, %v210
      %212 = vadd.xlane.f32.xlu0 %v211
      %v213 = vpop.xlane.xlu0 %212
      %v214 = vadd.f32 %v213, 0.0
      %s215 = scalar_lea.vmem %s1, 4
      %v216 = vld [vmem:[%s215] sm:$0xf]
      %s217 = scalar_lea.vmem %s138, 16
      %v218 = vld [vmem:[%s217] sm:$0xff]
      %v219 = vld [vmem:[%s217 + $0x8] sm:$0xff]
      %v222 = vunpack.c.l.b16 %v218
      %v223 = vunpack.c.h.b16 %v218
      %v224 = vunpack.c.l.b16 %v219
      %v225 = vunpack.c.h.b16 %v219
      %v226 = vpack.c.b16 %v224, %v222
      %v227 = vpack.c.b16 %v225, %v223
      %v231 = vsel %vm158, %v216, 0
      %233 = vmatprep.subr.bf16.mxu0 %v227
      %234 = vmatpush1.bf16.msra.mxu0 %v226
      %235 = vmatprep.subr.bf16.mxu0 0
      %236 = vmatpush1.bf16.msra.mxu0 0
      %237 = vmatprep.subr.bf16.mxu0 0
      %238 = vmatpush1.bf16.msra.mxu0 0
      %239 = vmatprep.subr.bf16.mxu0 0
      %240 = vmatpush1.bf16.msra.mxu0 0
      %241 = vmatprep.subr.bf16.mxu0 0
      %242 = vmatpush1.bf16.msra.mxu0 0
      %243 = vmatprep.subr.bf16.mxu0 0
      %244 = vmatpush1.bf16.msra.mxu0 0
      %245 = vmatprep.subr.bf16.mxu0 0
      %246 = vmatpush1.bf16.msra.mxu0 0
      %247 = vmatprep.subr.bf16.mxu0 0
      %248 = vmatpush1.bf16.msra.mxu0 0
      %249 = vmatprep.subr.bf16.mxu0 0
      %250 = vmatpush1.bf16.msra.mxu0 0
      %251 = vmatprep.subr.bf16.mxu0 0
      %252 = vmatpush1.bf16.msra.mxu0 0
      %253 = vmatprep.subr.bf16.mxu0 0
      %254 = vmatpush1.bf16.msra.mxu0 0
      %255 = vmatprep.subr.bf16.mxu0 0
      %256 = vmatpush1.bf16.msra.mxu0 0
      %257 = vmatprep.subr.bf16.mxu0 0
      %258 = vmatpush1.bf16.msra.mxu0 0
      %259 = vmatprep.subr.bf16.mxu0 0
      %260 = vmatpush1.bf16.msra.mxu0 0
      %261 = vmatprep.subr.bf16.mxu0 0
      %262 = vmatpush1.bf16.msra.mxu0 0
      %263 = vmatprep.subr.bf16.mxu0 0
      %264 = vmatpush1.bf16.msra.mxu0 0
      %265 = vmatprep.mubr.bf16.mxu0 0
      %266 = vmatmul.mubr.bf16.gmra.mrb[0].mxu0 %v231
      %v267 = vpop.f32.mrb[0].mxu0
      %v268 = vadd.f32 0.0, %v267
      %v269 = vpop.f32.mrb[0].mxu0
      %v270 = vadd.f32 0.0, %v269
      %v271 = vpop.f32.mrb[0].mxu0
      %v272 = vpop.f32.mrb[0].mxu0
      %273 = vdwg.mxu0
      %s274 = scalar_lea.vmem %s143, 16
      %275 = vst [vmem:[%s274] sm:$0xff] %v268
      %276 = vst [vmem:[%s274 + $0x8] sm:$0xff] %v270
      %v277 = vadd.f32 %v268, %v270
      %278 = vadd.xlane.f32.xlu0 %v277
      %v279 = vpop.xlane.xlu0 %278
      %v280 = vadd.f32 %v208, %v279
      %v281 = vmul.f32 %v268, %v268
      %v282 = vmul.f32 %v270, %v270
      %v283 = vadd.f32 %v281, %v282
      %284 = vadd.xlane.f32.xlu0 %v283
      %v285 = vpop.xlane.xlu0 %284
      %v286 = vadd.f32 %v214, %v285
      %s287 = scalar_lea.vmem %s1, 8
      %v288 = vld [vmem:[%s287] sm:$0xf]
      %s289 = scalar_lea.vmem %s138, 32
      %v290 = vld [vmem:[%s289] sm:$0xff]
      %v291 = vld [vmem:[%s289 + $0x8] sm:$0xff]
      %v294 = vunpack.c.l.b16 %v290
      %v295 = vunpack.c.h.b16 %v290
      %v296 = vunpack.c.l.b16 %v291
      %v297 = vunpack.c.h.b16 %v291
      %v298 = vpack.c.b16 %v296, %v294
      %v299 = vpack.c.b16 %v297, %v295
      %v303 = vsel %vm158, %v288, 0
      %305 = vmatprep.subr.bf16.mxu0 %v299
      %306 = vmatpush1.bf16.msra.mxu0 %v298
      %307 = vmatprep.subr.bf16.mxu0 0
      %308 = vmatpush1.bf16.msra.mxu0 0
      %309 = vmatprep.subr.bf16.mxu0 0
      %310 = vmatpush1.bf16.msra.mxu0 0
      %311 = vmatprep.subr.bf16.mxu0 0
      %312 = vmatpush1.bf16.msra.mxu0 0
      %313 = vmatprep.subr.bf16.mxu0 0
      %314 = vmatpush1.bf16.msra.mxu0 0
      %315 = vmatprep.subr.bf16.mxu0 0
      %316 = vmatpush1.bf16.msra.mxu0 0
      %317 = vmatprep.subr.bf16.mxu0 0
      %318 = vmatpush1.bf16.msra.mxu0 0
      %319 = vmatprep.subr.bf16.mxu0 0
      %320 = vmatpush1.bf16.msra.mxu0 0
      %321 = vmatprep.subr.bf16.mxu0 0
      %322 = vmatpush1.bf16.msra.mxu0 0
      %323 = vmatprep.subr.bf16.mxu0 0
      %324 = vmatpush1.bf16.msra.mxu0 0
      %325 = vmatprep.subr.bf16.mxu0 0
      %326 = vmatpush1.bf16.msra.mxu0 0
      %327 = vmatprep.subr.bf16.mxu0 0
      %328 = vmatpush1.bf16.msra.mxu0 0
      %329 = vmatprep.subr.bf16.mxu0 0
      %330 = vmatpush1.bf16.msra.mxu0 0
      %331 = vmatprep.subr.bf16.mxu0 0
      %332 = vmatpush1.bf16.msra.mxu0 0
      %333 = vmatprep.subr.bf16.mxu0 0
      %334 = vmatpush1.bf16.msra.mxu0 0
      %335 = vmatprep.subr.bf16.mxu0 0
      %336 = vmatpush1.bf16.msra.mxu0 0
      %337 = vmatprep.mubr.bf16.mxu0 0
      %338 = vmatmul.mubr.bf16.gmra.mrb[0].mxu0 %v303
      %v339 = vpop.f32.mrb[0].mxu0
      %v340 = vadd.f32 0.0, %v339
      %v341 = vpop.f32.mrb[0].mxu0
      %v342 = vadd.f32 0.0, %v341
      %v343 = vpop.f32.mrb[0].mxu0
      %v344 = vpop.f32.mrb[0].mxu0
      %345 = vdwg.mxu0
      %s346 = scalar_lea.vmem %s143, 32
      %347 = vst [vmem:[%s346] sm:$0xff] %v340
      %348 = vst [vmem:[%s346 + $0x8] sm:$0xff] %v342
      %v349 = vadd.f32 %v340, %v342
      %350 = vadd.xlane.f32.xlu0 %v349
      %v351 = vpop.xlane.xlu0 %350
      %v352 = vadd.f32 %v280, %v351
      %v353 = vmul.f32 %v340, %v340
      %v354 = vmul.f32 %v342, %v342
      %v355 = vadd.f32 %v353, %v354
      %356 = vadd.xlane.f32.xlu0 %v355
      %v357 = vpop.xlane.xlu0 %356
      %v358 = vadd.f32 %v286, %v357
      %s359 = scalar_lea.vmem %s1, 12
      %v360 = vld [vmem:[%s359] sm:$0xf]
      %s361 = scalar_lea.vmem %s138, 48
      %v362 = vld [vmem:[%s361] sm:$0xff]
      %v363 = vld [vmem:[%s361 + $0x8] sm:$0xff]
      %v366 = vunpack.c.l.b16 %v362
      %v367 = vunpack.c.h.b16 %v362
      %v368 = vunpack.c.l.b16 %v363
      %v369 = vunpack.c.h.b16 %v363
      %v370 = vpack.c.b16 %v368, %v366
      %v371 = vpack.c.b16 %v369, %v367
      %v375 = vsel %vm158, %v360, 0
      %377 = vmatprep.subr.bf16.mxu0 %v371
      %378 = vmatpush1.bf16.msra.mxu0 %v370
      %379 = vmatprep.subr.bf16.mxu0 0
      %380 = vmatpush1.bf16.msra.mxu0 0
      %381 = vmatprep.subr.bf16.mxu0 0
      %382 = vmatpush1.bf16.msra.mxu0 0
      %383 = vmatprep.subr.bf16.mxu0 0
      %384 = vmatpush1.bf16.msra.mxu0 0
      %385 = vmatprep.subr.bf16.mxu0 0
      %386 = vmatpush1.bf16.msra.mxu0 0
      %387 = vmatprep.subr.bf16.mxu0 0
      %388 = vmatpush1.bf16.msra.mxu0 0
      %389 = vmatprep.subr.bf16.mxu0 0
      %390 = vmatpush1.bf16.msra.mxu0 0
      %391 = vmatprep.subr.bf16.mxu0 0
      %392 = vmatpush1.bf16.msra.mxu0 0
      %393 = vmatprep.subr.bf16.mxu0 0
      %394 = vmatpush1.bf16.msra.mxu0 0
      %395 = vmatprep.subr.bf16.mxu0 0
      %396 = vmatpush1.bf16.msra.mxu0 0
      %397 = vmatprep.subr.bf16.mxu0 0
      %398 = vmatpush1.bf16.msra.mxu0 0
      %399 = vmatprep.subr.bf16.mxu0 0
      %400 = vmatpush1.bf16.msra.mxu0 0
      %401 = vmatprep.subr.bf16.mxu0 0
      %402 = vmatpush1.bf16.msra.mxu0 0
      %403 = vmatprep.subr.bf16.mxu0 0
      %404 = vmatpush1.bf16.msra.mxu0 0
      %405 = vmatprep.subr.bf16.mxu0 0
      %406 = vmatpush1.bf16.msra.mxu0 0
      %407 = vmatprep.subr.bf16.mxu0 0
      %408 = vmatpush1.bf16.msra.mxu0 0
      %409 = vmatprep.mubr.bf16.mxu0 0
      %410 = vmatmul.mubr.bf16.gmra.mrb[0].mxu0 %v375
      %v411 = vpop.f32.mrb[0].mxu0
      %v412 = vadd.f32 0.0, %v411
      %v413 = vpop.f32.mrb[0].mxu0
      %v414 = vadd.f32 0.0, %v413
      %v415 = vpop.f32.mrb[0].mxu0
      %v416 = vpop.f32.mrb[0].mxu0
      %417 = vdwg.mxu0
      %s418 = scalar_lea.vmem %s143, 48
      %419 = vst [vmem:[%s418] sm:$0xff] %v412
      %420 = vst [vmem:[%s418 + $0x8] sm:$0xff] %v414
      %v421 = vadd.f32 %v412, %v414
      %422 = vadd.xlane.f32.xlu0 %v421
      %v423 = vpop.xlane.xlu0 %422
      %v424 = vadd.f32 %v352, %v423
      %v425 = vmul.f32 %v412, %v412
      %v426 = vmul.f32 %v414, %v414
      %v427 = vadd.f32 %v425, %v426
      %428 = vadd.xlane.f32.xlu0 %v427
      %v429 = vpop.xlane.xlu0 %428
      %v430 = vadd.f32 %v358, %v429
      %v431 = vmul.f32 %v424, 0.0009765625
      %v432 = vmul.f32 %v430, 0.0009765625
      %v433 = vmul.f32 %v431, %v431
      %v434 = vsub.f32 %v432, %v433
      %v435 = vmax.f32 %v434, 0.0
      %v436 = vadd.f32 %v435, 1e-05
      %v437 = vrsqrt.pop %v436
      %v438 = vld [vmem:[%s143] sm:$0xff]
      %v439 = vld [vmem:[%s143 + $0x8] sm:$0xff]
      %v440 = vsub.f32 %v438, %v431
      %v441 = vsub.f32 %v439, %v431
      %v442 = vmul.f32 %v440, %v437
      %v443 = vmul.f32 %v441, %v437
      %v444 = vmax.f32 %v442, 0.0
      %v445 = vmax.f32 %v443, 0.0
      %446 = vst [vmem:[%s143] sm:$0xff] %v444
      %447 = vst [vmem:[%s143 + $0x8] sm:$0xff] %v445
      %v448 = vld [vmem:[%s274] sm:$0xff]
      %v449 = vld [vmem:[%s274 + $0x8] sm:$0xff]
      %v450 = vsub.f32 %v448, %v431
      %v451 = vsub.f32 %v449, %v431
      %v452 = vmul.f32 %v450, %v437
      %v453 = vmul.f32 %v451, %v437
      %v454 = vmax.f32 %v452, 0.0
      %v455 = vmax.f32 %v453, 0.0
      %456 = vst [vmem:[%s274] sm:$0xff] %v454
      %457 = vst [vmem:[%s274 + $0x8] sm:$0xff] %v455
      %v458 = vld [vmem:[%s346] sm:$0xff]
      %v459 = vld [vmem:[%s346 + $0x8] sm:$0xff]
      %v460 = vsub.f32 %v458, %v431
      %v461 = vsub.f32 %v459, %v431
      %v462 = vmul.f32 %v460, %v437
      %v463 = vmul.f32 %v461, %v437
      %v464 = vmax.f32 %v462, 0.0
      %v465 = vmax.f32 %v463, 0.0
      %466 = vst [vmem:[%s346] sm:$0xff] %v464
      %467 = vst [vmem:[%s346 + $0x8] sm:$0xff] %v465
      %v468 = vld [vmem:[%s418] sm:$0xff]
      %v469 = vld [vmem:[%s418 + $0x8] sm:$0xff]
      %v470 = vsub.f32 %v468, %v431
      %v471 = vsub.f32 %v469, %v431
      %v472 = vmul.f32 %v470, %v437
      %v473 = vmul.f32 %v471, %v437
      %v474 = vmax.f32 %v472, 0.0
      %v475 = vmax.f32 %v473, 0.0
      %476 = vst [vmem:[%s418] sm:$0xff] %v474
      %477 = vst [vmem:[%s418 + $0x8] sm:$0xff] %v475
      %p478 = scmp.lt.s32.totalorder %s13, 1
      %s479 = scalar_select %p478, %s13, 1
      %s480 = smul.addr %s479, 8
      %s481 = smul.addr %s480, 8
      %s482 = scalar_lea.vmem %s2, %s481
      // Predicated region
      $region29: #{upsample_forward.1} parent=27 // pred_check
        %p483 = pneg %p78
      $region30: #{upsample_forward.1} parent=27 // pred_check_branch
        %485 = sbr.rel (%p483) target = $region32
      $region31: #{upsample_forward.1} parent=27 // pred_region
        _
      $region32: #{upsample_forward.1} parent=27 // pred_fallthru
        _
    $region28: #{upsample_forward.1} parent=5 // pred_fallthru
      _
    %p486 = scmp.le.s32.totalorder 2, %s8
    // Predicated region
    $region33: #{upsample_forward.1} parent=5 // pred_check
      %p487 = pneg %p486
    $region34: #{upsample_forward.1} parent=5 // pred_check_branch
      %489 = sbr.rel (%p487) target = $region36
    $region35: #{upsample_forward.1} parent=5 // pred_region
      %s490 = ssub.s32 %s8, 2
      // Predicated region
      $region37: #{upsample_forward.1} parent=35 // pred_check
        %p491 = pneg %p84
      $region38: #{upsample_forward.1} parent=35 // pred_check_branch
        %493 = sbr.rel (%p491) target = $region40
      $region39: #{upsample_forward.1} parent=35 // pred_region
        %p494 = scmp.lt.s32.totalorder %s14, 1
        %s495 = scalar_select %p494, %s14, 1
        %s496 = smul.addr %s495, 8
        %s497 = smul.addr %s496, 8
        %s498 = scalar_lea.vmem %s2, %s497
      $region40: #{upsample_forward.1} parent=35 // pred_fallthru
        _
    $region36: #{upsample_forward.1} parent=5 // pred_fallthru
      _
  $region6: #{upsample_forward.1} parent=0 // loop_footer
    %s12 = sadd.s32 1, %s8
  $region7: #{upsample_forward.1} parent=0 // loop_footer_branch
    %7 = sbr.rel target = $region3
  $region8: #{upsample_forward.1} parent=0 // loop_exit
    _

</llo_original>
